<compile_context>
chip_gen: v6e
topology: v6e:2x2x1
jax: 0.10.0
libtpu: 0.0.40
codegen_flags: <defaults>
</compile_context>

<pallas_src>
import jax
import jax.numpy as jnp
from jax.experimental import pallas as pl
from jax.experimental.pallas import tpu as pltpu

NUM_JOINTS = 33
KP_DIM = NUM_JOINTS * 3          # 99
POSE_EMBED_DIM = 256

IMAGENET_MEAN = (0.485, 0.456, 0.406)
IMAGENET_STD = (0.229, 0.224, 0.225)

# ~1M f32 elements per block: 4 MiB in + 1 MiB u8 out per buffer; with
# double buffering ~10 MiB, under every generation's scoped-VMEM default.
_TARGET_BLOCK_ELEMS = 1 << 20


# ---------------------------------------------------------------------------
# Kernel 1: fused UnNormalize -> *255 -> clamp(0, 255) -> uint8
# ---------------------------------------------------------------------------
def _make_channel_unnorm_kernel(mean, std):
    m = tuple(float(v) for v in mean)
    s = tuple(float(v) for v in std)

    def kernel(img_ref, out_ref):
        # Channel index is grid axis 1 -> scalar select, no per-element work.
        c = pl.program_id(1)
        std_c = jnp.where(c == 0, s[0], jnp.where(c == 1, s[1], s[2]))
        mean_c = jnp.where(c == 0, m[0], jnp.where(c == 1, m[1], m[2]))
        # Same op order as PyTorch: t.mul(std).add(mean), then *255, clamp, u8.
        y = (img_ref[...] * std_c + mean_c) * 255.0
        out_ref[...] = jnp.clip(y, 0.0, 255.0).astype(jnp.uint8)

    return kernel


def _rowwise_unnorm_kernel(img_ref, std_ref, mean_ref, out_ref):
    # std/mean come in as (B*C, 1) columns -> lane broadcast.
    y = (img_ref[...] * std_ref[...] + mean_ref[...]) * 255.0
    out_ref[...] = jnp.clip(y, 0.0, 255.0).astype(jnp.uint8)


def _unnorm_flat(images, lane_width):
    """Dense path: H*W is a multiple of `lane_width` (itself a multiple of 128)."""
    B, C, H, W = images.shape
    hw = H * W
    nrows = hw // lane_width

    tm = min(nrows, max(32, _TARGET_BLOCK_ELEMS // lane_width))
    if tm < nrows:
        tm = max(32, (tm // 32) * 32)      # dense u8 sublane tiling

    imgs4 = images.reshape(B, C, nrows, lane_width)   # contiguous -> free view
    kernel = _make_channel_unnorm_kernel(IMAGENET_MEAN, IMAGENET_STD)

    out = pl.pallas_call(
        kernel,
        out_shape=jax.ShapeDtypeStruct((B, C, nrows, lane_width), jnp.uint8),
        grid=(B, C, pl.cdiv(nrows, tm)),
        in_specs=[pl.BlockSpec((None, None, tm, lane_width),
                               lambda b, c, j: (b, c, j, 0))],
        out_specs=pl.BlockSpec((None, None, tm, lane_width),
                               lambda b, c, j: (b, c, j, 0)),
        compiler_params=pltpu.CompilerParams(
            dimension_semantics=("parallel", "parallel", "parallel")),
    )(imgs4)
    return out.reshape(B, C, H, W)


def _unnorm_rowwise_fallback(images):
    """H*W not a multiple of 128: (B*3, H*W) layout, bounded column tiles,
    masked last tile.  Never allocates more than ~5 MiB per block."""
    B, C, H, W = images.shape
    hw = H * W
    R = B * C
    imgs2 = images.reshape(R, hw)

    # Per-row (= per (image, channel)) constants, built once (tiny).
    std_col = jnp.tile(jnp.asarray(IMAGENET_STD, jnp.float32), B).reshape(R, 1)
    mean_col = jnp.tile(jnp.asarray(IMAGENET_MEAN, jnp.float32), B).reshape(R, 1)

    target = max(128, ((_TARGET_BLOCK_ELEMS // R) // 128) * 128)
    c_tile = hw if hw <= target else target

    out = pl.pallas_call(
        _rowwise_unnorm_kernel,
        out_shape=jax.ShapeDtypeStruct((R, hw), jnp.uint8),
        grid=(pl.cdiv(hw, c_tile),),
        in_specs=[pl.BlockSpec((R, c_tile), lambda j: (0, j)),
                  pl.BlockSpec((R, 1), lambda j: (0, 0)),
                  pl.BlockSpec((R, 1), lambda j: (0, 0))],
        out_specs=pl.BlockSpec((R, c_tile), lambda j: (0, j)),
        compiler_params=pltpu.CompilerParams(
            dimension_semantics=("parallel",)),
    )(imgs2, std_col, mean_col)
    return out.reshape(B, C, H, W)


def unnormalize_to_uint8(images):
    """images: [B, 3, H, W] float32 (ImageNet-normalized).
    Returns uint8 [B, 3, H, W] == ((x*std + mean)*255).clamp(0,255).to(uint8)."""
    B, C, H, W = images.shape
    assert C == 3, "PoseEmbeddingModule un-normalizes 3-channel images"
    hw = H * W
    for lane_width in (512, 256, 128):
        if hw % lane_width == 0:
            return _unnorm_flat(images, lane_width)
    return _unnorm_rowwise_fallback(images)


# ---------------------------------------------------------------------------
# Kernel 2: batched keypoint linear layer   y = kp @ W^T + b
# ---------------------------------------------------------------------------
def _linear_kernel(kp_ref, w_ref, b_ref, out_ref):
    out_ref[...] = (
        jnp.dot(kp_ref[...], w_ref[...], preferred_element_type=jnp.float32)
        + b_ref[...]
    )


def prepare_linear_params(weight, bias):
    """Hoisted one-time prep: transpose + zero-pad weight to (128, 256),
    bias to a (1, 256) row.  Done once at init, not per forward."""
    D, K = weight.shape
    Kp = ((K + 127) // 128) * 128
    w_pad = jnp.zeros((Kp, D), jnp.float32).at[:K, :].set(
        weight.T.astype(jnp.float32))
    b_row = bias.reshape(1, D).astype(jnp.float32)
    return w_pad, b_row


def keypoint_linear_batched(kp, w_pad, b_row, *, row_tile=256):
    """kp: [N, 99] float32 (all boxes in the batch, concatenated).
    w_pad: [128, 256], b_row: [1, 256] from prepare_linear_params.
    Returns [N, 256] float32."""
    N, K = kp.shape
    Kp, D = w_pad.shape
    if N == 0:
        return jnp.zeros((0, D), jnp.float32)

    if N <= row_tile:
        Np = max(8, ((N + 7) // 8) * 8)
        tm = Np                                  # single grid step
    else:
        Np = ((N + row_tile - 1) // row_tile) * row_tile
        tm = row_tile

    # Zero rows / zero K-padding do not change the matmul; padded rows sliced off.
    kp_pad = jnp.zeros((Np, Kp), jnp.float32).at[:N, :K].set(kp)

    out = pl.pallas_call(
        _linear_kernel,
        out_shape=jax.ShapeDtypeStruct((Np, D), jnp.float32),
        grid=(Np // tm,),
        in_specs=[
            pl.BlockSpec((tm, Kp), lambda i: (i, 0)),
            pl.BlockSpec((Kp, D), lambda i: (0, 0)),   # weight stays VMEM-resident
            pl.BlockSpec((1, D), lambda i: (0, 0)),
        ],
        out_specs=pl.BlockSpec((tm, D), lambda i: (i, 0)),
        compiler_params=pltpu.CompilerParams(
            dimension_semantics=("parallel",)),
    )(kp_pad, w_pad, b_row)
    return out[:N]


# ---------------------------------------------------------------------------
# Glue: box handling + synthetic "MediaPipe" landmarks -> absolute keypoints
# ---------------------------------------------------------------------------
def _cxcywh_to_xyxy(boxes, img_w, img_h):
    cx, cy, w, h = boxes[:, 0], boxes[:, 1], boxes[:, 2], boxes[:, 3]
    x_min = (cx - 0.5 * w) * img_w
    y_min = (cy - 0.5 * h) * img_h
    x_max = (cx + 0.5 * w) * img_w
    y_max = (cy + 0.5 * h) * img_h
    return jnp.stack([x_min, y_min, x_max, y_max], axis=1)


def _boxes_to_keypoints(boxes_xyxy, landmarks, img_w, img_h):
    """Normalized landmarks [N, 33, 3] -> absolute keypoints [N, 99]."""
    # int() truncation + clipping, as in the PyTorch forward.
    x_min = jnp.maximum(0.0, jnp.trunc(boxes_xyxy[:, 0]))
    y_min = jnp.maximum(0.0, jnp.trunc(boxes_xyxy[:, 1]))
    x_max = jnp.minimum(float(img_w), jnp.trunc(boxes_xyxy[:, 2]))
    y_max = jnp.minimum(float(img_h), jnp.trunc(boxes_xyxy[:, 3]))

    abs_x = x_min[:, None] + landmarks[..., 0] * (x_max - x_min)[:, None]
    abs_y = y_min[:, None] + landmarks[..., 1] * (y_max - y_min)[:, None]
    vis = landmarks[..., 2]
    kp = jnp.stack([abs_x, abs_y, vis], axis=-1).reshape(
        boxes_xyxy.shape[0], KP_DIM)

    # Empty / degenerate crop -> zero keypoints (matches the PyTorch branch).
    valid = ((x_max > x_min) & (y_max > y_min))[:, None]
    return jnp.where(valid, kp, 0.0).astype(jnp.float32)


def pose_embedding_forward(images, boxes_list, w_pad, b_row,
                           bbox_format="xyxy", rng_key=None):
    """Mirror of PoseEmbeddingModule.forward.

    images:      [B, 3, H, W] float32 (ImageNet-normalized).
    boxes_list:  list of [N_i, 4] float32 arrays.
    w_pad/b_row: from prepare_linear_params (hoisted weight padding).
    Returns (pose_embeddings, keypoints_out, images_uint8)."""
    B, C, H, W = images.shape
    if rng_key is None:
        rng_key = jax.random.PRNGKey(0)

    # Fused un-normalize + *255 + clamp + uint8 (single Pallas kernel).
    images_uint8 = unnormalize_to_uint8(images)

    counts = [int(b.shape[0]) for b in boxes_list]
    total = sum(counts)

    if total == 0:
        all_kp = jnp.zeros((0, KP_DIM), jnp.float32)
        all_embed = jnp.zeros((0, POSE_EMBED_DIM), jnp.float32)
    else:
        boxes_all = jnp.concatenate(
            [b for b in boxes_list if b.shape[0] > 0], axis=0)
        if bbox_format == "cxcywh":
            boxes_abs = _cxcywh_to_xyxy(boxes_all, W, H)
        elif bbox_format == "xyxy":
            boxes_abs = boxes_all
        else:
            raise ValueError(f"Unsupported bbox_format: {bbox_format}")

        # TODO(synk): MediaPipe self.pose.process() has no Pallas/JAX
        # equivalent; one batched draw of synthetic normalized landmarks.
        landmarks = jax.random.uniform(
            rng_key, (total, NUM_JOINTS, 3), dtype=jnp.float32)
        all_kp = _boxes_to_keypoints(boxes_abs, landmarks, W, H)
        # One batched MXU linear for every box in the batch.
        all_embed = keypoint_linear_batched(all_kp, w_pad, b_row)

    pose_embeddings, keypoints_out = [], []
    offset = 0
    for n in counts:
        if n == 0:
            pose_embeddings.append(jnp.zeros((0, POSE_EMBED_DIM), jnp.float32))
            keypoints_out.append(jnp.zeros((0, KP_DIM), jnp.float32))
        else:
            pose_embeddings.append(all_embed[offset:offset + n])
            keypoints_out.append(all_kp[offset:offset + n])
        offset += n

    return pose_embeddings, keypoints_out, images_uint8


# ---------------------------------------------------------------------------
# Deterministic parameter init (xavier_uniform weight, zero bias)
# ---------------------------------------------------------------------------
def init_params(key, out_dim=POSE_EMBED_DIM, in_dim=KP_DIM):
    fan_in, fan_out = in_dim, out_dim
    bound = (6.0 / (fan_in + fan_out)) ** 0.5
    weight = jax.random.uniform(key, (out_dim, in_dim), jnp.float32,
                                minval=-bound, maxval=bound)
    bias = jnp.zeros((out_dim,), jnp.float32)
    return weight, bias


if __name__ == "__main__":
    key = jax.random.PRNGKey(0)
    k_img, k_box, k_param, k_lm = jax.random.split(key, 4)

    B, C, H, W = 2, 3, 16, 16
    N_BOXES = 4

    # Normalized images (roughly ImageNet-normalized range).
    images = jax.random.normal(k_img, (B, C, H, W), jnp.float32)

    # Deterministic xyxy boxes inside the image.
    boxes_list = []
    for b in range(B):
        kb = jax.random.fold_in(k_box, b)
        k1, k2 = jax.random.split(kb)
        mins = jax.random.uniform(k1, (N_BOXES, 2), minval=0.0, maxval=W / 2.0)
        sizes = jax.random.uniform(k2, (N_BOXES, 2), minval=2.0, maxval=W / 2.0)
        maxs = jnp.minimum(mins + sizes, float(W))
        boxes_list.append(
            jnp.concatenate([mins, maxs], axis=1).astype(jnp.float32))

    weight, bias = init_params(k_param)
    w_pad, b_row = prepare_linear_params(weight, bias)   # hoisted, once

    pose_embeds, keypoints, imgs_u8 = pose_embedding_forward(
        images, boxes_list, w_pad, b_row, bbox_format="xyxy", rng_key=k_lm)

    jax.block_until_ready(imgs_u8)
    for pe in pose_embeds:
        jax.block_until_ready(pe)

    # --- correctness: fused un-normalize vs pure-JAX reference --------------
    mean = jnp.asarray(IMAGENET_MEAN, jnp.float32).reshape(1, 3, 1, 1)
    std = jnp.asarray(IMAGENET_STD, jnp.float32).reshape(1, 3, 1, 1)
    ref_u8 = jnp.clip((images * std + mean) * 255.0, 0.0, 255.0).astype(jnp.uint8)
    diff = jnp.abs(imgs_u8.astype(jnp.int16) - ref_u8.astype(jnp.int16)).max()
    assert int(diff) <= 1, f"unnormalize mismatch: {int(diff)}"

    # --- correctness: non-128-aligned fallback path --------------------------
    imgs_odd = jax.random.normal(k_img, (2, 3, 5, 7), jnp.float32)
    odd_u8 = unnormalize_to_uint8(imgs_odd)
    jax.block_until_ready(odd_u8)
    ref_odd = jnp.clip((imgs_odd * std + mean) * 255.0, 0.0, 255.0).astype(jnp.uint8)
    diff_odd = jnp.abs(odd_u8.astype(jnp.int16) - ref_odd.astype(jnp.int16)).max()
    assert int(diff_odd) <= 1, f"fallback unnormalize mismatch: {int(diff_odd)}"

    # --- correctness: keypoint linear vs reference ---------------------------
    kp_all = jnp.concatenate(keypoints, axis=0)
    emb_all = jnp.concatenate(pose_embeds, axis=0)
    ref_emb = jnp.dot(kp_all, weight.T,
                      precision=jax.lax.Precision.HIGHEST) + bias
    assert jnp.allclose(emb_all, ref_emb, atol=1e-2, rtol=1e-3), \
        "keypoint linear mismatch"

    assert imgs_u8.shape == (B, C, H, W) and imgs_u8.dtype == jnp.uint8
    assert all(pe.shape == (N_BOXES, POSE_EMBED_DIM) for pe in pose_embeds)
    assert all(kp.shape == (N_BOXES, KP_DIM) for kp in keypoints)

    print("KERNEL_OK")
</pallas_src>

<mosaic_0001>
module attributes {stable_mosaic.version = 11 : i64} {
  func.func @kernel(%arg0: i32, %arg1: i32, %arg2: i32, %arg3: memref<1x1x1x256xf32, #tpu.memory_space<vmem>>, %arg4: memref<1x1x1x256xi8, #tpu.memory_space<vmem>>) attributes {dimension_semantics = [#tpu.dimension_semantics<parallel>, #tpu.dimension_semantics<parallel>, #tpu.dimension_semantics<parallel>], iteration_bounds = array<i64: 2, 3, 1>, scalar_prefetch = 0 : i64, scratch_operands = 0 : i64, tpu.core_type = #tpu.core_type<tc>, window_params = [{transform_indices = @transform_0, window_bounds = array<i64: 1, 1, 1, 256>}, {transform_indices = @transform_1, window_bounds = array<i64: 1, 1, 1, 256>}]} {
    %c0_i32 = arith.constant 0 : i32
    %0 = arith.cmpi eq, %arg1, %c0_i32 : i32
    %c1_i32 = arith.constant 1 : i32
    %1 = arith.cmpi eq, %arg1, %c1_i32 : i32
    %cst = arith.constant 2.240000e-01 : f32
    %cst_0 = arith.constant 2.250000e-01 : f32
    %2 = arith.select %1, %cst, %cst_0 : f32
    %cst_1 = arith.constant 2.290000e-01 : f32
    %3 = arith.select %0, %cst_1, %2 : f32
    %c0_i32_2 = arith.constant 0 : i32
    %4 = arith.cmpi eq, %arg1, %c0_i32_2 : i32
    %c1_i32_3 = arith.constant 1 : i32
    %5 = arith.cmpi eq, %arg1, %c1_i32_3 : i32
    %cst_4 = arith.constant 4.560000e-01 : f32
    %cst_5 = arith.constant 4.060000e-01 : f32
    %6 = arith.select %5, %cst_4, %cst_5 : f32
    %cst_6 = arith.constant 4.850000e-01 : f32
    %7 = arith.select %4, %cst_6, %6 : f32
    %c0 = arith.constant 0 : index
    %c0_7 = arith.constant 0 : index
    %c0_8 = arith.constant 0 : index
    %c0_9 = arith.constant 0 : index
    %8 = vector.load %arg3[%c0, %c0_7, %c0_8, %c0_9] : memref<1x1x1x256xf32, #tpu.memory_space<vmem>>, vector<1x1x1x256xf32>
    %9 = vector.shape_cast %8 : vector<1x1x1x256xf32> to vector<1x256xf32>
    %10 = vector.broadcast %3 : f32 to vector<1x256xf32>
    %11 = arith.mulf %9, %10 : vector<1x256xf32>
    %12 = vector.broadcast %7 : f32 to vector<1x256xf32>
    %13 = arith.addf %11, %12 : vector<1x256xf32>
    %cst_10 = arith.constant 2.550000e+02 : f32
    %14 = vector.broadcast %cst_10 : f32 to vector<1x256xf32>
    %15 = arith.mulf %13, %14 : vector<1x256xf32>
    %cst_11 = arith.constant 0.000000e+00 : f32
    %cst_12 = arith.constant 2.550000e+02 : f32
    %16 = vector.broadcast %cst_11 : f32 to vector<1x256xf32>
    %17 = arith.maximumf %16, %15 : vector<1x256xf32>
    %18 = vector.broadcast %cst_12 : f32 to vector<1x256xf32>
    %19 = arith.minimumf %18, %17 : vector<1x256xf32>
    %20 = arith.fptoui %19 : vector<1x256xf32> to vector<1x256xi8>
    %c0_13 = arith.constant 0 : index
    %c0_14 = arith.constant 0 : index
    %c0_15 = arith.constant 0 : index
    %c0_16 = arith.constant 0 : index
    %21 = vector.load %arg4[%c0_13, %c0_14, %c0_15, %c0_16] : memref<1x1x1x256xi8, #tpu.memory_space<vmem>>, vector<1x1x1x256xi8>
    %22 = vector.shape_cast %21 : vector<1x1x1x256xi8> to vector<1x256xi8>
    %23 = vector.shape_cast %20 : vector<1x256xi8> to vector<1x1x1x256xi8>
    tpu.vector_store %arg4[%c0_13, %c0_14, %c0_15, %c0_16], %23 {strides = array<i32>} : memref<1x1x1x256xi8, #tpu.memory_space<vmem>>, vector<1x1x1x256xi8>,
    return
  }
  func.func @transform_0(%arg0: i32, %arg1: i32, %arg2: i32) -> (i32, i32, i32, i32) {
    %c0_i32 = arith.constant 0 : i32
    %c0_i32_0 = arith.constant 0 : i32
    return %arg0, %arg1, %arg2, %c0_i32 : i32, i32, i32, i32
  }
  func.func @transform_1(%arg0: i32, %arg1: i32, %arg2: i32) -> (i32, i32, i32, i32) {
    %c0_i32 = arith.constant 0 : i32
    %c0_i32_0 = arith.constant 0 : i32
    return %arg0, %arg1, %arg2, %c0_i32 : i32, i32, i32, i32
  }
}

</mosaic_0001>

<llo_original>
// kernel: tpu_custom_call.1
$region0: #{tpu_custom_call.1}
  #allocation0 [shape = 'u32[]', space=smem, size = 0x4, offset = 0x4, fixed_abs, tag = 'smem constant byte address 0x4 - core index']
  #allocation1 [shape = 'u32[144,128]{1,0:T(1,128)}', space=vmem, size = 0x12000, scoped, tag = 'internal scratch']
  %s0 = inlined_call_operand.hbm [shape: f32[2,3,1,256], index: 0, kind: input, shape index: {}]
  %s1 = inlined_call_operand.vmem [shape: u8[2,3,1,256], index: 1, kind: output, shape index: {}]
  %s2 = sld [smem:[#allocation0]]
  $region41: #{tpu_custom_call.1} parent=0
    _
  %s4 = ssub.s32 1, %s2
  %s5 = scalar_select 0, %s4, %s2
  $region1: #{tpu_custom_call.1} parent=0
    #allocation2 [shape = 'u8[2048]{0}', space=vmem, size = 0x800, scoped, tag = 'input window, operand 0']
    #allocation3 [shape = 's32[2]{0}', space=sflag, size = 0x8, scoped, tag = 'scoped memory for tpu_custom_call.1']
    %6 = vsyncpa [#allocation3], 0
    %s7 = scalar_lea.sflag [#allocation3], 1
    %8 = vsyncpa %s7, 0
    loop: start=0, step=1, limit=8
    $region2: #{tpu_custom_call.1} parent=1 // loop_pre_header
      _
    $region3: #{tpu_custom_call.1} parent=1 // loop_header
      %s10 = sphi 0, %s14
      %p11 = scmp.ge.s32.totalorder %s10, 8
      %s17 = sphi 0, %s36
      %s18 = sphi 0, %s32
      %s19 = sphi 0, %s28
      %s20 = sphi 0, %s17
      %s21 = sphi 0, %s18
      %s22 = sphi 0, %s19
      %s23 = sphi 0, %s20
      %s24 = sphi 0, %s21
      %s25 = sphi 0, %s22
      %s43 = sphi 0, %s45
      %s46 = sphi 0, %s43
      %s47 = sphi 0, %s46
      %s63 = sphi 0, %s47
      %s73 = sphi 0, %s75
      %s76 = sphi 0, %s73
      %s77 = sphi 0, %s76
      %s93 = sphi 0, %s77
    $region4: #{tpu_custom_call.1} parent=1 // loop_header_branch
      %13 = sbr.rel (%p11) target = $region8
    $region5: #{tpu_custom_call.1} parent=1 // loop_body
      %s15 = ssub.s32 %s10, 1
      %s16 = ssub.s32 %s10, 2
      %s26 = sadd.s32 1, %s19
      %p27 = scmp.ge.s32.totalorder %s26, 1
      %s28 = scalar_select %p27, 0, %s26
      %s29 = sadd.s32 1, %s18
      %s30 = scalar_select %p27, %s29, %s18
      %p31 = scmp.ge.s32.totalorder %s30, 3
      %s32 = scalar_select %p31, 0, %s30
      %s33 = sadd.s32 1, %s17
      %s34 = scalar_select %p31, %s33, %s17
      %p35 = scmp.ge.s32.totalorder %s34, 2
      %s36 = scalar_select %p35, 0, %s34
      %s37 = ssub.s32 %s17, %s36
      %s38 = ssub.s32 %s18, %s32
      %s39 = sor.u32 %s37, %s38
      %s40 = ssub.s32 %s19, %s28
      %s41 = sor.u32 %s39, %s40
      %p42 = scmp.eq.s32.totalorder %s41, 0
      %s44 = sadd.s32 %s43, 1
      %s45 = scalar_select %p42, %s43, %s44
      %p48 = pneg %p42
      %p49 = scmp.eq.s32.totalorder %s10, 5
      %p50 = por %p48, %p49
      %p51 = scmp.ne.s32.totalorder %s43, %s46
      %p52 = scmp.eq.s32.totalorder %s10, 0
      %p53 = por %p51, %p52
      %p54 = scmp.ne.s32.totalorder %s43, %s46
      %p55 = scmp.eq.s32.totalorder %s15, 5
      %p56 = por %p54, %p55
      %p57 = scmp.ne.s32.totalorder %s46, %s47
      %p58 = scmp.eq.s32.totalorder %s15, 0
      %p59 = por %p57, %p58
      %p60 = scmp.ne.s32.totalorder %s46, %s47
      %p61 = scmp.eq.s32.totalorder %s16, 5
      %p62 = por %p60, %p61
      %p64 = scmp.ne.s32.totalorder %s47, %s63
      %p65 = scmp.eq.s32.totalorder %s16, 0
      %p66 = por %p64, %p65
      %s67 = ssub.s32 %s17, %s36
      %s68 = ssub.s32 %s18, %s32
      %s69 = sor.u32 %s67, %s68
      %s70 = ssub.s32 %s19, %s28
      %s71 = sor.u32 %s69, %s70
      %p72 = scmp.eq.s32.totalorder %s71, 0
      %s74 = sadd.s32 %s73, 1
      %s75 = scalar_select %p72, %s73, %s74
      %p78 = pneg %p72
      %p79 = scmp.eq.s32.totalorder %s10, 5
      %p80 = por %p78, %p79
      %p81 = scmp.ne.s32.totalorder %s73, %s76
      %p82 = scmp.eq.s32.totalorder %s10, 0
      %p83 = por %p81, %p82
      %p84 = scmp.ne.s32.totalorder %s73, %s76
      %p85 = scmp.eq.s32.totalorder %s15, 5
      %p86 = por %p84, %p85
      %p87 = scmp.ne.s32.totalorder %s76, %s77
      %p88 = scmp.eq.s32.totalorder %s15, 0
      %p89 = por %p87, %p88
      %p90 = scmp.ne.s32.totalorder %s76, %s77
      %p91 = scmp.eq.s32.totalorder %s16, 5
      %p92 = por %p90, %p91
      %p94 = scmp.ne.s32.totalorder %s77, %s93
      %p95 = scmp.eq.s32.totalorder %s16, 0
      %p96 = por %p94, %p95
      %p97 = scmp.le.s32.totalorder 1, %s10
      %p98 = scmp.lt.s32.totalorder %s10, 7
      %p99 = pnand %p97, %p98
      %p100 = pneg %p99
      // Predicated region
      $region9: #{tpu_custom_call.1} parent=5 // pred_check
        _
      $region10: #{tpu_custom_call.1} parent=5 // pred_check_branch
        %102 = sbr.rel (%p99) target = $region12
      $region11: #{tpu_custom_call.1} parent=5 // pred_region
        %s103 = ssub.s32 %s10, 1
      $region12: #{tpu_custom_call.1} parent=5 // pred_fallthru
        _
      %p104 = scmp.lt.s32.totalorder %s10, 6
      // Predicated region
      $region13: #{tpu_custom_call.1} parent=5 // pred_check
        %p105 = pneg %p104
      $region14: #{tpu_custom_call.1} parent=5 // pred_check_branch
        %107 = sbr.rel (%p105) target = $region16
      $region15: #{tpu_custom_call.1} parent=5 // pred_region
        // Predicated region
        $region17: #{tpu_custom_call.1} parent=15 // pred_check
          %p108 = pneg %p53
        $region18: #{tpu_custom_call.1} parent=15 // pred_check_branch
          %110 = sbr.rel (%p108) target = $region20
        $region19: #{tpu_custom_call.1} parent=15 // pred_region
          %s111 = sand.u32 %s43, 1
          %s112 = scalar_lea.sflag [#allocation3], %s111
          %s113 = sand.u32 %s43, 1
          %s114 = smul.addr %s113, 2
          %s115 = scalar_lea.vmem [#allocation2], %s114
          %s117 = ssub.s32 32, 32
          %118 = vsyncadd %s112, %s117
          %s119 = smul.addr %s19, 2
          %s120 = smul.addr %s18, 2
          %s121 = sadd.s32 %s119, %s120
          %s122 = smul.addr %s17, 6
          %s123 = sadd.s32 %s121, %s122
          %s124 = smul.addr %s123, 16
          %s125 = scalar_lea.hbm %s0, %s124
          %s127 = sshll.u32 %s115, 4
          %s128 = int_to_ptr.vmem [resolvable:$true] %s127
          %130 = dma.hbm_to_vmem [thread:$0]  %s125, 32, %s128, %s112
        $region20: #{tpu_custom_call.1} parent=15 // pred_fallthru
          _
      $region16: #{tpu_custom_call.1} parent=5 // pred_fallthru
        _
      %p131 = scmp.le.s32.totalorder 1, %s10
      %p132 = scmp.lt.s32.totalorder %s10, 7
      %p133 = pnand %p131, %p132
      %p134 = pneg %p133
      // Predicated region
      $region21: #{tpu_custom_call.1} parent=5 // pred_check
        _
      $region22: #{tpu_custom_call.1} parent=5 // pred_check_branch
        %136 = sbr.rel (%p133) target = $region24
      $region23: #{tpu_custom_call.1} parent=5 // pred_region
        %s137 = ssub.s32 %s10, 1
        %s138 = sand.u32 %s46, 1
        %s139 = scalar_lea.sflag [#allocation3], %s138
        %s140 = sand.u32 %s46, 1
        %s141 = smul.addr %s140, 2
        %s142 = scalar_lea.vmem [#allocation2], %s141
        // Predicated region
        $region25: #{tpu_custom_call.1} parent=23 // pred_check
          %p143 = pneg %p59
        $region26: #{tpu_custom_call.1} parent=23 // pred_check_branch
          %145 = sbr.rel (%p143) target = $region28
        $region27: #{tpu_custom_call.1} parent=23 // pred_region
          %146 = dma.done %s139, 32
        $region28: #{tpu_custom_call.1} parent=23 // pred_fallthru
          _
        %s147 = sand.u32 %s46, 1
        %s148 = scalar_lea.sflag [#allocation3], %s147
        %s149 = sand.u32 %s46, 1
        %s150 = smul.addr %s149, 2
        %s151 = scalar_lea.vmem [#allocation2], %s150
        %p152 = pneg %p59
        %p153 = pneg %p56
        %p154 = pneg %p89
        %p155 = pneg %p86
        %p156 = scmp.lt.s32.totalorder %s20, 1
        %s157 = scalar_select %p156, %s20, 1
        %p158 = scmp.lt.s32.totalorder %s21, 2
        %s159 = scalar_select %p158, %s21, 2
        %p160 = scmp.lt.s32.totalorder %s22, 0
        %s161 = scalar_select %p160, %s22, 0
        %s162 = smul.addr %s161, 2
        %s163 = smul.addr %s159, 2
        %s164 = sadd.s32 %s162, %s163
        %s165 = smul.addr %s157, 6
        %s166 = sadd.s32 %s164, %s165
        %s167 = scalar_lea.vmem %s1, %s166
        %p168 = scmp.lt.s32.totalorder %s20, 1
        %s169 = scalar_select %p168, %s20, 1
        %p170 = scmp.lt.s32.totalorder %s21, 2
        %s171 = scalar_select %p170, %s21, 2
        %p172 = scmp.lt.s32.totalorder %s22, 0
        %s173 = scalar_select %p172, %s22, 0
        %s174 = smul.addr %s173, 2
        %s175 = smul.addr %s171, 2
        %s176 = sadd.s32 %s174, %s175
        %s177 = smul.addr %s169, 6
        %s178 = sadd.s32 %s176, %s177
        %s179 = scalar_lea.vmem %s1, %s178
        %p180 = scmp.eq.s32.totalorder %s21, 0
        %p181 = scmp.eq.s32.totalorder %s21, 1
        %s182 = scalar_select %p181, 0.224, 0.225
        %s183 = scalar_select %p180, 0.229, %s182
        %s184 = scalar_select %p181, 0.456, 0.406
        %s185 = scalar_select %p180, 0.485, %s184
        %v186 = vld [vmem:[%s142] sm:$0x3]
        %v187 = vstv %s183
        %v188 = vmul.f32 %v186, %v187
        %v189 = vstv %s185
        %v190 = vadd.f32 %v188, %v189
        %v191 = vmul.f32 %v190, 255.0
        %v192 = vmax.f32 %v191, 0.0
        %v193 = vmin.f32 %v192, 255.0
        %v194 = vmax.f32 %v193, 0.0
        %v195 = vmin.f32 %v194, 255.0
        %v196 = vcvt.f32.s32.to.zero.pseudo %v195
        %v197 = vlaneseq
        %v198 = vshrl.u32 %v197, 7
        %v199 = vsub.s32 0, %v198
        %v200 = vrot.slane %v196, %v199
        %v201 = vlaneseq
        %v202 = vshrl.u32 %v201, 7
        %v203 = vsub.s32 1, %v202
        %v204 = vrot.slane %v196, %v203
        %v205 = vpack.c.b16 %v200, %v200
        %v206 = vpack.c.b8 %v205, %v205
        %v207 = vpack.c.b16 %v204, %v204
        %v208 = vpack.c.b8 %v207, %v207
        %v209 = vcombine.low %v206, %v208
        %v211 = vunpack.c.l.s4 1966171168
        %v212 = vunpack.c.0.s8 %v211
        %v213 = vlaneseq
        %v214 = vshrl.u32 %v213, 7
        %v215 = vsub.s32 %v212, %v214
        %v216 = vrot.slane %v209, %v215
        %v218 = vunpack.c.l.s4 1966171168
        %v219 = vunpack.c.0.s8 %v218
        %v220 = vlaneseq
        %v221 = vshrl.u32 %v220, 7
        %v222 = vsub.s32 %v219, %v221
        %v223 = vrot.slane %v216, %v222
        %vm224 = vcmask 1040384
        %vm225 = vsmask.f32 0
        %vm226 = vmand %vm224, %vm225
        %vm227 = vcmask 1041409
        %vm228 = vsmask.f32 1024
        %vm229 = vmand %vm227, %vm228
        %vm230 = vmor %vm229, %vm226
        %v231 = vld [vmem:[%s179] sm:$0x3]
        %v232 = vsel %vm230, %v223, %v231
        %233 = vst [vmem:[%s179] sm:$0x3] %v232
        %p234 = scmp.lt.s32.totalorder %s20, 1
        %s235 = scalar_select %p234, %s20, 1
        %p236 = scmp.lt.s32.totalorder %s21, 2
        %s237 = scalar_select %p236, %s21, 2
        %p238 = scmp.lt.s32.totalorder %s22, 0
        %s239 = scalar_select %p238, %s22, 0
        %s240 = smul.addr %s239, 2
        %s241 = smul.addr %s237, 2
        %s242 = sadd.s32 %s240, %s241
        %s243 = smul.addr %s235, 6
        %s244 = sadd.s32 %s242, %s243
        %s245 = scalar_lea.vmem %s1, %s244
        // Predicated region
        $region29: #{tpu_custom_call.1} parent=23 // pred_check
          %p246 = pneg %p86
        $region30: #{tpu_custom_call.1} parent=23 // pred_check_branch
          %248 = sbr.rel (%p246) target = $region32
        $region31: #{tpu_custom_call.1} parent=23 // pred_region
          _
        $region32: #{tpu_custom_call.1} parent=23 // pred_fallthru
          _
      $region24: #{tpu_custom_call.1} parent=5 // pred_fallthru
        _
      %p249 = scmp.le.s32.totalorder 2, %s10
      // Predicated region
      $region33: #{tpu_custom_call.1} parent=5 // pred_check
        %p250 = pneg %p249
      $region34: #{tpu_custom_call.1} parent=5 // pred_check_branch
        %252 = sbr.rel (%p250) target = $region36
      $region35: #{tpu_custom_call.1} parent=5 // pred_region
        %s253 = ssub.s32 %s10, 2
        // Predicated region
        $region37: #{tpu_custom_call.1} parent=35 // pred_check
          %p254 = pneg %p92
        $region38: #{tpu_custom_call.1} parent=35 // pred_check_branch
          %256 = sbr.rel (%p254) target = $region40
        $region39: #{tpu_custom_call.1} parent=35 // pred_region
          %p257 = scmp.lt.s32.totalorder %s23, 1
          %s258 = scalar_select %p257, %s23, 1
          %p259 = scmp.lt.s32.totalorder %s24, 2
          %s260 = scalar_select %p259, %s24, 2
          %p261 = scmp.lt.s32.totalorder %s25, 0
          %s262 = scalar_select %p261, %s25, 0
          %s263 = smul.addr %s262, 2
          %s264 = smul.addr %s260, 2
          %s265 = sadd.s32 %s263, %s264
          %s266 = smul.addr %s258, 6
          %s267 = sadd.s32 %s265, %s266
          %s268 = scalar_lea.vmem %s1, %s267
        $region40: #{tpu_custom_call.1} parent=35 // pred_fallthru
          _
      $region36: #{tpu_custom_call.1} parent=5 // pred_fallthru
        _
    $region6: #{tpu_custom_call.1} parent=1 // loop_footer
      %s14 = sadd.s32 1, %s10
    $region7: #{tpu_custom_call.1} parent=1 // loop_footer_branch
      %9 = sbr.rel target = $region3
    $region8: #{tpu_custom_call.1} parent=1 // loop_exit
      _
    %269 = vsyncpa [#allocation3], 1
    %s270 = scalar_lea.sflag [#allocation3], 1
    %271 = vsyncpa %s270, 1

</llo_original>
